<compile_context>
chip_gen: v7x
topology: tpu7x:2x2x1
jax: 0.10.0
libtpu: 0.0.40
codegen_flags: <defaults>
</compile_context>

<pallas_src>
import math
import functools

import jax
import jax.numpy as jnp
from jax import lax
from jax.experimental import pallas as pl
from jax.experimental.pallas import tpu as pltpu


# ----------------------------------------------------------------------------
# Per-chip knobs (v5e/v6e have 128 MiB physical VMEM, v7x has 64 MiB)
# ----------------------------------------------------------------------------
def _tpu_vmem_capacity():
    try:
        return pltpu.get_tpu_info().vmem_capacity_bytes
    except Exception:
        return 64 * 1024 * 1024      # conservative (v7x-sized) fallback


_BIG_VMEM = _tpu_vmem_capacity() >= 100 * 1024 * 1024
_ATTN_VMEM_LIMIT = (64 if _BIG_VMEM else 32) * 1024 * 1024
_LINEAR_VMEM_LIMIT = 32 * 1024 * 1024
_LINEAR_BLOCK_M = 1024 if _BIG_VMEM else 512


# ----------------------------------------------------------------------------
# Linear projection: y = x @ W_t + b   (W_t already transposed: (Cin, Cout))
# ----------------------------------------------------------------------------
def _linear_kernel(x_ref, wt_ref, b_ref, o_ref):
    x = x_ref[...].astype(jnp.bfloat16)        # bf16 MXU operands
    w = wt_ref[...].astype(jnp.bfloat16)       # no-op (weights stored bf16)
    acc = jnp.dot(x, w, preferred_element_type=jnp.float32)   # f32 accumulate
    o_ref[...] = (acc + b_ref[...]).astype(o_ref.dtype)


def pallas_linear(x, w_t, b, *, out_dtype=None, block_m=_LINEAR_BLOCK_M):
    """y = x @ w_t + b for x of shape (..., Cin); w_t is (Cin, Cout)."""
    lead = x.shape[:-1]
    cin = x.shape[-1]
    cout = w_t.shape[1]
    if out_dtype is None:
        out_dtype = x.dtype
    x2 = x.reshape(-1, cin)
    m = x2.shape[0]
    tm = m if m <= block_m else block_m
    grid = (pl.cdiv(m, tm),)

    y = pl.pallas_call(
        _linear_kernel,
        out_shape=jax.ShapeDtypeStruct((m, cout), out_dtype),
        grid=grid,
        in_specs=[
            pl.BlockSpec((tm, cin), lambda i: (i, 0)),
            pl.BlockSpec((cin, cout), lambda i: (0, 0)),   # resident, fetched once
            pl.BlockSpec((1, cout), lambda i: (0, 0)),
        ],
        out_specs=pl.BlockSpec((tm, cout), lambda i: (i, 0)),
        compiler_params=pltpu.CompilerParams(
            dimension_semantics=("parallel",),
            vmem_limit_bytes=_LINEAR_VMEM_LIMIT),
    )(x2, w_t, b.reshape(1, cout).astype(jnp.float32))
    return y.reshape(*lead, cout)


# ----------------------------------------------------------------------------
# Additive-mask prologue (once per batch, shared by all heads, stored int8):
#   hor = binarize(mask >= .5), ver = binarize(mask_ver >= .5).T
#   add = -100 where hor+ver == 1, else 0      (comb in {0,1,2})
# ----------------------------------------------------------------------------
def _mask_add_kernel(m_ref, mv_ref, add_ref):
    hor = jnp.where(m_ref[0] >= 0.5, 1.0, 0.0)
    ver = jnp.where(mv_ref[0] >= 0.5, 1.0, 0.0).T
    comb = hor + ver
    add_ref[0] = jnp.where(comb == 1.0, -100.0, 0.0).astype(add_ref.dtype)


def build_additive_mask(mask, mask_ver):
    b, s, _ = mask.shape
    t = s if s <= 256 else 256                 # row tile of the output
    grid = (b, pl.cdiv(s, t))
    return pl.pallas_call(
        _mask_add_kernel,
        out_shape=jax.ShapeDtypeStruct((b, s, s), jnp.int8),  # {0,-100} exact
        grid=grid,
        in_specs=[
            pl.BlockSpec((1, t, s), lambda bi, i: (bi, i, 0)),
            pl.BlockSpec((1, s, t), lambda bi, i: (bi, 0, i)),
        ],
        out_specs=pl.BlockSpec((1, t, s), lambda bi, i: (bi, i, 0)),
        compiler_params=pltpu.CompilerParams(
            dimension_semantics=("parallel", "parallel"),
            vmem_limit_bytes=_LINEAR_VMEM_LIMIT),
    )(mask.astype(jnp.float32), mask_ver.astype(jnp.float32))


# ----------------------------------------------------------------------------
# Masked scaled-dot-product attention.
# qkvb: (3, B*H, S, D)  (q/k/v stacked, head-split, bf16) -- passed 3x with
#       different BlockSpecs (Q is qi-tiled; K/V are full-sequence blocks).
# add : (B, S, S) int8 additive mask or None (resident across the head axis).
# Outputs: attn_out (B*H, S, D) bf16, weights (B*H, 1, S) f32 (lane-dense).
# ----------------------------------------------------------------------------
def _attn_body(q_ref, k_ref, v_ref, add_ref, o_ref, w_ref, *, scale, inv_s):
    q = q_ref[0, 0].astype(jnp.bfloat16)       # (tq, D)
    k = k_ref[0, 0].astype(jnp.bfloat16)       # (S , D)
    v = v_ref[0, 0].astype(jnp.bfloat16)       # (S , D)
    tq = q.shape[0]

    # scores = q @ k^T / (sqrt(dk)+1e-9): bf16 operands, f32 accumulation.
    scores = lax.dot_general(
        q, k, (((1,), (1,)), ((), ())),
        preferred_element_type=jnp.float32) * scale           # (tq, S) f32

    if add_ref is not None:
        # PyTorch aliases weight=scores then does scores += mask in-place,
        # so the returned weights include the additive mask too.
        scores = scores + add_ref[0].astype(jnp.float32)

    # Stable softmax with deferred normalization: the unnormalized exp feeds
    # the PV matmul; only the (tq, D) accumulator is scaled by 1/denom.
    m = jnp.max(scores, axis=-1, keepdims=True)
    e = jnp.exp(scores - m)                                   # (tq, S) f32
    denom = jnp.sum(e, axis=-1, keepdims=True)                # (tq, 1)
    pv = jnp.dot(e.astype(jnp.bfloat16), v,
                 preferred_element_type=jnp.float32)          # (tq, D) f32
    o_ref[0] = (pv * (1.0 / denom)).astype(o_ref.dtype)       # exact reciprocal

    # weight.mean(dim=2): XLU cross-lane reduce + tiny (tq,1)->(1,tq) relayout
    # (no more ones-row MXU matmul), stored lane-dense into the (1,1,tq) block.
    row_mean = jnp.sum(scores, axis=-1, keepdims=True) * inv_s
    w_ref[0] = row_mean.reshape(1, tq).astype(w_ref.dtype)


def _attn_kernel_masked(q_ref, k_ref, v_ref, add_ref, o_ref, w_ref, *, scale, inv_s):
    _attn_body(q_ref, k_ref, v_ref, add_ref, o_ref, w_ref, scale=scale, inv_s=inv_s)


def _attn_kernel_nomask(q_ref, k_ref, v_ref, o_ref, w_ref, *, scale, inv_s):
    _attn_body(q_ref, k_ref, v_ref, None, o_ref, w_ref, scale=scale, inv_s=inv_s)


def _pick_q_tile(s):
    # Cap at 256: bounds the (tq, S) score/mask blocks for v7x's 64 MiB VMEM,
    # keeps the lane-dense weights block legal (256 % 128 == 0), and the q axis
    # uses pl.cdiv so S need not divide (partial trailing block is masked).
    return 256 if s > 256 else s


def masked_attention(qkvb, add, head_num):
    _, bh, s, d = qkvb.shape
    batch = bh // head_num
    hn = head_num
    scale = 1.0 / (math.sqrt(d) + 1e-9)
    inv_s = 1.0 / s
    tq = _pick_q_tile(s)
    nq = pl.cdiv(s, tq)
    # Grid (batch, q_tile, head): head is innermost & "arbitrary" so the
    # additive-mask block (index depends only on (batch, q_tile)) stays
    # resident in VMEM across all heads.
    grid = (batch, nq, hn)

    q_spec = pl.BlockSpec((1, 1, tq, d), lambda b, qi, h: (0, b * hn + h, qi, 0))
    k_spec = pl.BlockSpec((1, 1, s, d), lambda b, qi, h: (1, b * hn + h, 0, 0))
    v_spec = pl.BlockSpec((1, 1, s, d), lambda b, qi, h: (2, b * hn + h, 0, 0))
    out_spec = pl.BlockSpec((1, tq, d), lambda b, qi, h: (b * hn + h, qi, 0))
    w_spec = pl.BlockSpec((1, 1, tq), lambda b, qi, h: (b * hn + h, 0, qi))

    out_shapes = (jax.ShapeDtypeStruct((bh, s, d), jnp.bfloat16),
                  jax.ShapeDtypeStruct((bh, 1, s), jnp.float32))
    cparams = pltpu.CompilerParams(
        dimension_semantics=("parallel", "parallel", "arbitrary"),
        vmem_limit_bytes=_ATTN_VMEM_LIMIT)

    if add is not None:
        kernel = functools.partial(_attn_kernel_masked, scale=scale, inv_s=inv_s)
        in_specs = [q_spec, k_spec, v_spec,
                    # mask shared across heads & resident over the inner head axis
                    pl.BlockSpec((1, tq, s), lambda b, qi, h: (b, qi, 0))]
        args = (qkvb, qkvb, qkvb, add)
    else:
        kernel = functools.partial(_attn_kernel_nomask, scale=scale, inv_s=inv_s)
        in_specs = [q_spec, k_spec, v_spec]
        args = (qkvb, qkvb, qkvb)

    out, w = pl.pallas_call(
        kernel,
        out_shape=out_shapes,
        grid=grid,
        in_specs=in_specs,
        out_specs=(out_spec, w_spec),
        compiler_params=cparams,
    )(*args)
    return out, w[:, 0, :]


# ----------------------------------------------------------------------------
# Module wrapper (parameters + glue)
# ----------------------------------------------------------------------------
def _init_linear(key, cin, cout):
    kw, kb = jax.random.split(key)
    bound = 1.0 / math.sqrt(cin)
    w = jax.random.uniform(kw, (cout, cin), jnp.float32, -bound, bound)
    b = jax.random.uniform(kb, (cout,), jnp.float32, -bound, bound)
    return w, b


class MaskMultiHeadAttentionPallas:
    def __init__(self, in_features, head_num, key):
        if in_features % head_num != 0:
            raise ValueError("in_features must be divisible by head_num")
        self.in_features = in_features
        self.head_num = head_num
        c = in_features
        keys = jax.random.split(key, 6)
        wq, bq = _init_linear(keys[0], c, c)
        wk, bk = _init_linear(keys[1], c, c)
        wv, bv = _init_linear(keys[2], c, c)
        wo, bo = _init_linear(keys[3], c, c)
        # fused, pre-transposed QKV weight (Cin, 3C); bf16 copies for the MXU
        self.w_qkv_t = jnp.concatenate([wq.T, wk.T, wv.T], axis=1).astype(jnp.bfloat16)
        self.b_qkv = jnp.concatenate([bq, bk, bv]).reshape(1, 3 * c)
        self.wo_t = wo.T.astype(jnp.bfloat16)
        self.bo = bo.reshape(1, c)
        # proj_q / proj_s are only used in the (unimplemented) cross branch.
        self.wpq, self.bpq = _init_linear(keys[4], 1, c)
        self.wps, self.bps = _init_linear(keys[5], 1, c)

    def __call__(self, q, k, v, mask=None, cross=False, mask_ver=None, pro_pred=None):
        if cross:
            # TODO(synk): cross-attention branch not implemented.
            raise NotImplementedError("cross-attention branch not implemented")

        b, s, c = q.shape
        h = self.head_num
        d = c // h

        # ---- projections (fused when q/k/v are the same tensor) ----
        if (q is k) and (k is v):
            qkv = pallas_linear(q, self.w_qkv_t, self.b_qkv, out_dtype=jnp.bfloat16)
        else:
            qp = pallas_linear(q, self.w_qkv_t[:, :c], self.b_qkv[:, :c],
                               out_dtype=jnp.bfloat16)
            kp = pallas_linear(k, self.w_qkv_t[:, c:2 * c], self.b_qkv[:, c:2 * c],
                               out_dtype=jnp.bfloat16)
            vp = pallas_linear(v, self.w_qkv_t[:, 2 * c:], self.b_qkv[:, 2 * c:],
                               out_dtype=jnp.bfloat16)
            qkv = jnp.concatenate([qp, kp, vp], axis=-1)

        # head split in one transpose: (B,S,3C) -> (3, B*H, S, D)
        # TODO(synk): when D % 128 == 0 this transpose (and the merge below) can
        #             be replaced by head indexing in the BlockSpecs.
        qkvb = (qkv.reshape(b, s, 3, h, d)
                   .transpose(2, 0, 3, 1, 4)
                   .reshape(3, b * h, s, d))

        # ---- additive mask: once per batch (int8), shared/resident per head ----
        if mask is not None and mask_ver is not None:
            add = build_additive_mask(mask, mask_ver)
        else:
            add = None   # skips the mask stream entirely

        yb, w = masked_attention(qkvb, add, h)    # (BH,S,D) bf16, (BH,S) f32

        # _reshape_from_batches + output projection
        y = yb.reshape(b, h, s, d).transpose(0, 2, 1, 3).reshape(b, s, c)
        y = pallas_linear(y, self.wo_t, self.bo, out_dtype=jnp.float32)

        w = w.reshape(b, h, s).mean(axis=1)       # head-mean of weights
        return y, w


# ----------------------------------------------------------------------------
# Demo
# ----------------------------------------------------------------------------
if __name__ == "__main__":
    B, S, C, H = 2, 8, 32, 4  # in_features=32, head_num=4, sub_dim=8

    root = jax.random.PRNGKey(0)
    k_param, kx, kq, kk, kv, km, kmv = jax.random.split(root, 7)

    module = MaskMultiHeadAttentionPallas(in_features=C, head_num=H, key=k_param)

    x = jax.random.normal(kx, (B, S, C), jnp.float32)
    mask = jax.random.uniform(km, (B, S, S), jnp.float32)
    mask_ver = jax.random.uniform(kmv, (B, S, S), jnp.float32)

    # Path 1: self-attention with masks (fused QKV + int8 mask prologue + masked attn)
    y1, w1 = module(x, x, x, mask=mask, cross=False, mask_ver=mask_ver)

    # Path 2: distinct q/k/v, no mask (separate projections + maskless attn)
    q = jax.random.normal(kq, (B, S, C), jnp.float32)
    k = jax.random.normal(kk, (B, S, C), jnp.float32)
    v = jax.random.normal(kv, (B, S, C), jnp.float32)
    y2, w2 = module(q, k, v, mask=None, cross=False)

    jax.block_until_ready((y1, w1, y2, w2))
    assert y1.shape == (B, S, C) and w1.shape == (B, S)
    assert y2.shape == (B, S, C) and w2.shape == (B, S)
    print("KERNEL_OK")
</pallas_src>

<mosaic_0001>
module attributes {stable_mosaic.version = 11 : i64} {
  func.func @_linear_kernel(%arg0: i32, %arg1: memref<16x32xf32, #tpu.memory_space<vmem>>, %arg2: memref<32x96xbf16, #tpu.memory_space<vmem>>, %arg3: memref<1x96xf32, #tpu.memory_space<vmem>>, %arg4: memref<16x96xbf16, #tpu.memory_space<vmem>>) attributes {dimension_semantics = [#tpu.dimension_semantics<parallel>], iteration_bounds = array<i64: 1>, scalar_prefetch = 0 : i64, scratch_operands = 0 : i64, tpu.core_type = #tpu.core_type<tc>, window_params = [{transform_indices = @transform_0, window_bounds = array<i64: 16, 32>}, {pipeline_mode = #tpu.pipeline_mode<synchronous>, transform_indices = @transform_1, window_bounds = array<i64: 32, 96>}, {pipeline_mode = #tpu.pipeline_mode<synchronous>, transform_indices = @transform_2, window_bounds = array<i64: 1, 96>}, {transform_indices = @transform_3, window_bounds = array<i64: 16, 96>}]} {
    %c0 = arith.constant 0 : index
    %c0_0 = arith.constant 0 : index
    %0 = vector.load %arg1[%c0, %c0_0] : memref<16x32xf32, #tpu.memory_space<vmem>>, vector<16x32xf32>
    %1 = arith.truncf %0 : vector<16x32xf32> to vector<16x32xbf16>
    %c0_1 = arith.constant 0 : index
    %c0_2 = arith.constant 0 : index
    %2 = vector.load %arg2[%c0_1, %c0_2] : memref<32x96xbf16, #tpu.memory_space<vmem>>, vector<32x96xbf16>
    %cst = arith.constant dense<0.000000e+00> : vector<16x96xf32>
    %3 = tpu.matmul %1, %2, %cst {dimension_numbers = #tpu.dot_dimension_numbers<[1], [0], [0], [1], [0, 0, 1, 1], [], []>} : vector<16x32xbf16>, vector<32x96xbf16>, vector<16x96xf32> -> vector<16x96xf32>
    %c0_3 = arith.constant 0 : index
    %c0_4 = arith.constant 0 : index
    %4 = vector.load %arg3[%c0_3, %c0_4] : memref<1x96xf32, #tpu.memory_space<vmem>>, vector<1x96xf32>
    %5 = vector.broadcast %4 : vector<1x96xf32> to vector<16x96xf32>
    %6 = arith.addf %3, %5 : vector<16x96xf32>
    %7 = arith.truncf %6 : vector<16x96xf32> to vector<16x96xbf16>
    %c0_5 = arith.constant 0 : index
    %c0_6 = arith.constant 0 : index
    %8 = vector.load %arg4[%c0_5, %c0_6] : memref<16x96xbf16, #tpu.memory_space<vmem>>, vector<16x96xbf16>
    tpu.vector_store %arg4[%c0_5, %c0_6], %7 {strides = array<i32>} : memref<16x96xbf16, #tpu.memory_space<vmem>>, vector<16x96xbf16>,
    return
  }
  func.func @transform_0(%arg0: i32) -> (i32, i32) {
    %c0_i32 = arith.constant 0 : i32
    %c0_i32_0 = arith.constant 0 : i32
    return %arg0, %c0_i32 : i32, i32
  }
  func.func @transform_1(%arg0: i32) -> (i32, i32) {
    %c0_i32 = arith.constant 0 : i32
    %c0_i32_0 = arith.constant 0 : i32
    %c0_i32_1 = arith.constant 0 : i32
    return %c0_i32, %c0_i32_0 : i32, i32
  }
  func.func @transform_2(%arg0: i32) -> (i32, i32) {
    %c0_i32 = arith.constant 0 : i32
    %c0_i32_0 = arith.constant 0 : i32
    %c0_i32_1 = arith.constant 0 : i32
    return %c0_i32, %c0_i32_0 : i32, i32
  }
  func.func @transform_3(%arg0: i32) -> (i32, i32) {
    %c0_i32 = arith.constant 0 : i32
    %c0_i32_0 = arith.constant 0 : i32
    return %arg0, %c0_i32 : i32, i32
  }
}

</mosaic_0001>

<llo_original>
// kernel: tpu_custom_call.1
$region0: #{tpu_custom_call.1}
  #allocation0 [shape = 'u32[]', space=smem, size = 0x4, offset = 0x4, fixed_abs, tag = 'smem constant byte address 0x4 - core index']
  #allocation1 [shape = 'u32[144,128]{1,0:T(1,128)}', space=vmem, size = 0x12000, scoped, tag = 'internal scratch']
  %s0 = inlined_call_operand.hbm [shape: f32[16,32], index: 0, kind: input, shape index: {}]
  %s1 = inlined_call_operand.hbm [shape: bf16[32,96], index: 1, kind: input, shape index: {}]
  %s2 = inlined_call_operand.vmem [shape: f32[1,96], index: 2, kind: input, shape index: {}]
  %s3 = inlined_call_operand.hbm [shape: bf16[16,96], index: 3, kind: output, shape index: {}]
  %s4 = sld [smem:[#allocation0]]
  $region30: #{tpu_custom_call.1} parent=0
    _
  %s6 = ssub.s32 1, %s4
  %s7 = scalar_select 0, %s6, %s4
  $region1: #{tpu_custom_call.1} parent=0
    #allocation2 [shape = 'u8[8192]{0}', space=vmem, size = 0x2000, scoped, tag = 'input window, operand 0, single buffered']
    #allocation3 [shape = 's32[1]{0}', space=sflag, size = 0x4, scoped, tag = 'scoped memory for tpu_custom_call.1']
    #allocation4 [shape = 's32[1]{0}', space=sflag, size = 0x4, scoped, tag = 'scoped memory for tpu_custom_call.1']
    #allocation5 [shape = 'u8[8192]{0}', space=vmem, size = 0x2000, scoped, tag = 'input window, operand 1, single buffered']
    #allocation6 [shape = 's32[1]{0}', space=sflag, size = 0x4, scoped, tag = 'scoped memory for tpu_custom_call.1']
    #allocation7 [shape = 'u8[4096]{0}', space=vmem, size = 0x1000, scoped, tag = 'output window, operand 0, single buffered']
    %8 = vsyncpa [#allocation3], 0
    %9 = vsyncpa [#allocation6], 0
    %10 = vsyncpa [#allocation4], 0
    // Predicated region
    $region2: #{tpu_custom_call.1} parent=1 // pred_check
      _
    $region3: #{tpu_custom_call.1} parent=1 // pred_check_branch
      %12 = sbr.rel (0) target = $region5
    $region4: #{tpu_custom_call.1} parent=1 // pred_region
      %s14 = ssub.s32 256, 256
      %15 = vsyncadd [#allocation3], %s14
      %s16 = sshll.u32 [#allocation2], 4
      %s17 = int_to_ptr.vmem [resolvable:$true] %s16
      %22 = dma.hbm_to_vmem [thread:$0]  %s0, 256, %s17, [#allocation3], 128, 128, 8
    $region5: #{tpu_custom_call.1} parent=1 // pred_fallthru
      _
    // Predicated region
    $region6: #{tpu_custom_call.1} parent=1 // pred_check
      _
    $region7: #{tpu_custom_call.1} parent=1 // pred_check_branch
      %24 = sbr.rel (0) target = $region9
    $region8: #{tpu_custom_call.1} parent=1 // pred_region
      %s26 = ssub.s32 256, 256
      %27 = vsyncadd [#allocation6], %s26
      %s28 = sshll.u32 [#allocation5], 4
      %s29 = int_to_ptr.vmem [resolvable:$true] %s28
      %34 = dma.hbm_to_vmem [thread:$0]  %s1, 256, %s29, [#allocation6], 64, 64, 4
    $region9: #{tpu_custom_call.1} parent=1 // pred_fallthru
      _
    // Predicated region
    $region10: #{tpu_custom_call.1} parent=1 // pred_check
      _
    $region11: #{tpu_custom_call.1} parent=1 // pred_check_branch
      %36 = sbr.rel (0) target = $region13
    $region12: #{tpu_custom_call.1} parent=1 // pred_region
      _
    $region13: #{tpu_custom_call.1} parent=1 // pred_fallthru
      _
    // Predicated region
    $region14: #{tpu_custom_call.1} parent=1 // pred_check
      _
    $region15: #{tpu_custom_call.1} parent=1 // pred_check_branch
      %38 = sbr.rel (0) target = $region17
    $region16: #{tpu_custom_call.1} parent=1 // pred_region
      %39 = dma.done [#allocation3], 256
    $region17: #{tpu_custom_call.1} parent=1 // pred_fallthru
      _
    // Predicated region
    $region18: #{tpu_custom_call.1} parent=1 // pred_check
      _
    $region19: #{tpu_custom_call.1} parent=1 // pred_check_branch
      %41 = sbr.rel (0) target = $region21
    $region20: #{tpu_custom_call.1} parent=1 // pred_region
      %42 = dma.done [#allocation6], 256
    $region21: #{tpu_custom_call.1} parent=1 // pred_fallthru
      _
    %v44 = vld [vmem:[#allocation2] sm:$0xff]
    %v45 = vld [vmem:[#allocation2 + $0x8] sm:$0xff]
    %v46 = vpack.c.bf16 %v45, %v44
    %v47 = vld [vmem:[#allocation5] sm:$0xf]
    %v48 = vld [vmem:[#allocation5 + $0x4] sm:$0xf]
    %v49 = vld [vmem:[#allocation5 + $0x8] sm:$0xf]
    %v50 = vld [vmem:[#allocation5 + $0xc] sm:$0xf]
    %v51 = vld [vmem:[%s2] sm:$0x1]
    %v53 = vlaneseq
    %v54 = vshrl.u32 %v53, 7
    %v55 = vsub.s32 0, %v54
    %v56 = vrot.slane %v51, %v55
    %v62 = vunpack.c.l.b16 %v47
    %v63 = vunpack.c.l.b16 %v48
    %v64 = vunpack.c.l.b16 %v49
    %v65 = vunpack.c.l.b16 %v50
    %v66 = vpack.c.b16 %v63, %v62
    %v67 = vpack.c.b16 %v65, %v64
    %vm70 = vcmask 261120
    %v72 = vsel %vm70, %v46, 0
    %74 = vmatprep.subr.bf16.mxu0 0
    %75 = vmatpush1.bf16.msra.mxu0 %v66
    %76 = vmatprep.subr.bf16.mxu0 0
    %77 = vmatpush1.bf16.msra.mxu0 %v67
    %78 = vmatprep.subr.bf16.mxu0 0
    %79 = vmatpush1.bf16.msra.mxu0 0
    %80 = vmatprep.subr.bf16.mxu0 0
    %81 = vmatpush1.bf16.msra.mxu0 0
    %82 = vmatprep.subr.bf16.mxu0 0
    %83 = vmatpush1.bf16.msra.mxu0 0
    %84 = vmatprep.subr.bf16.mxu0 0
    %85 = vmatpush1.bf16.msra.mxu0 0
    %86 = vmatprep.subr.bf16.mxu0 0
    %87 = vmatpush1.bf16.msra.mxu0 0
    %88 = vmatprep.subr.bf16.mxu0 0
    %89 = vmatpush1.bf16.msra.mxu0 0
    %90 = vmatprep.subr.bf16.mxu0 0
    %91 = vmatpush1.bf16.msra.mxu0 0
    %92 = vmatprep.subr.bf16.mxu0 0
    %93 = vmatpush1.bf16.msra.mxu0 0
    %94 = vmatprep.subr.bf16.mxu0 0
    %95 = vmatpush1.bf16.msra.mxu0 0
    %96 = vmatprep.subr.bf16.mxu0 0
    %97 = vmatpush1.bf16.msra.mxu0 0
    %98 = vmatprep.subr.bf16.mxu0 0
    %99 = vmatpush1.bf16.msra.mxu0 0
    %100 = vmatprep.subr.bf16.mxu0 0
    %101 = vmatpush1.bf16.msra.mxu0 0
    %102 = vmatprep.subr.bf16.mxu0 0
    %103 = vmatpush1.bf16.msra.mxu0 0
    %104 = vmatprep.subr.bf16.mxu0 0
    %105 = vmatpush1.bf16.msra.mxu0 0
    %106 = vmatprep.mubr.bf16.mxu0 0
    %107 = vmatmul.mubr.bf16.gmra.mrb[0].mxu0 %v72
    %v108 = vpop.f32.mrb[0].mxu0
    %v109 = vadd.f32 %v56, %v108
    %v110 = vpop.f32.mrb[0].mxu0
    %v111 = vpop.f32.mrb[0].mxu0
    %v112 = vadd.f32 %v56, %v111
    %v113 = vpop.f32.mrb[0].mxu0
    %114 = vdwg.mxu0
    %v115 = vpack.c.bf16 %v112, %v109
    %v117 = vunpack.c.l.b16 %v115
    %v118 = vunpack.c.h.b16 %v115
    %v119 = vpack.c.b16 %v117, %v117
    %v120 = vpack.c.b16 %v118, %v118
    %vm123 = vcmask 781312
    %124 = vst.msk [vmem:[#allocation7] sm:$0xf] %vm123, %v119
    %125 = vst.msk [vmem:[#allocation7 + $0x4] sm:$0xf] %vm123, %v120
    // Predicated region
    $region22: #{tpu_custom_call.1} parent=1 // pred_check
      _
    $region23: #{tpu_custom_call.1} parent=1 // pred_check_branch
      %127 = sbr.rel (0) target = $region25
    $region24: #{tpu_custom_call.1} parent=1 // pred_region
      %s129 = ssub.s32 128, 128
      %130 = vsyncadd [#allocation4], %s129
      %s131 = sshll.u32 [#allocation7], 4
      %s132 = int_to_ptr.vmem [resolvable:$true] %s131
      %137 = dma.vmem_to_hbm [thread:$0]  %s132, 128, %s3, [#allocation4], 64, 64, 4
    $region25: #{tpu_custom_call.1} parent=1 // pred_fallthru
      _
    // Predicated region
    $region26: #{tpu_custom_call.1} parent=1 // pred_check
      _
    $region27: #{tpu_custom_call.1} parent=1 // pred_check_branch
      %139 = sbr.rel (0) target = $region29
    $region28: #{tpu_custom_call.1} parent=1 // pred_region
      %140 = dma.done [#allocation4], 128
    $region29: #{tpu_custom_call.1} parent=1 // pred_fallthru
      _
    %141 = vsyncpa [#allocation3], 1
    %142 = vsyncpa [#allocation6], 1
    %143 = vsyncpa [#allocation4], 1

</llo_original>
